<compile_context>
chip_gen: v6e
topology: v6e:2x2x1
jax: 0.10.0
libtpu: 0.0.40
codegen_flags: <defaults>
</compile_context>

<pallas_src>
import functools

import jax
import jax.numpy as jnp
from jax import lax
from jax.experimental import pallas as pl
from jax.experimental.pallas import tpu as pltpu

LEAK = 0.2     # LeakyReLU negative slope
EPS = 1e-5     # BatchNorm eps


def _leaky_relu(h):
    return jnp.where(h > 0, h, LEAK * h)


def _residual_block_kernel(x_ref, w1_ref, w2_ref, bn1_ref, bn2_ref, o_ref, *,
                           H, W):
    """One batch element.

    x_ref  : (Cin,  H*W)    f32, channels in sublanes, flattened spatial in lanes
    w1_ref : (Cmid, 9*Cin)  bf16, columns ordered (kh, kw, cin)
    w2_ref : (Cout, 9*Cmid) bf16
    bn?_ref: (C, 2)         f32, [:, 0] = scale, [:, 1] = bias (folded BN)
    o_ref  : (Cout, H*W)    lane-dense output (H*W % 128 == 0)
    """
    HW = H * W
    x = x_ref[...]                                      # (Cin, HW) f32

    def bn_lrelu(h, p_ref):
        h = h * p_ref[:, 0:1] + p_ref[:, 1:2]           # folded BatchNorm (f32 FMA)
        return jnp.where(h > 0, h, LEAK * h)            # LeakyReLU(0.2)

    def im2col(h):
        # h: (C, HW) f32 -> (9*C, HW) bf16 patch matrix for a 3x3 conv with
        # replication padding; row order = (tap = kh*3 + kw, cin).
        # Row shifts (slice+concat along lanes) get edge clamping for free;
        # column shifts are fixed up at row boundaries with an iota mask.
        c, _ = h.shape
        col = lax.broadcasted_iota(jnp.int32, (c, HW), 1)
        if (W & (W - 1)) == 0:                          # W power of two: cheap AND
            wpos = col & (W - 1)
        else:
            wpos = col % W
        first_col = wpos == 0
        last_col = wpos == (W - 1)

        up = jnp.concatenate([h[:, :W], h[:, :HW - W]], axis=1)    # row r-1 (clamped)
        down = jnp.concatenate([h[:, W:], h[:, HW - W:]], axis=1)  # row r+1 (clamped)

        taps = []
        for hsh in (up, h, down):                                  # kh = 0, 1, 2
            left = jnp.where(
                first_col, hsh,
                jnp.concatenate([hsh[:, :1], hsh[:, :HW - 1]], axis=1))   # col c-1
            right = jnp.where(
                last_col, hsh,
                jnp.concatenate([hsh[:, 1:], hsh[:, HW - 1:]], axis=1))   # col c+1
            taps += [left, hsh, right]                             # kw = 0, 1, 2
        return jnp.concatenate(taps, axis=0).astype(jnp.bfloat16)

    # bn1 -> lrelu -> replication-pad 3x3 conv1: one bf16 MXU matmul, f32 accum
    h = bn_lrelu(x, bn1_ref)
    h = jnp.dot(w1_ref[...], im2col(h), preferred_element_type=jnp.float32)

    # bn2 -> lrelu -> replication-pad 3x3 conv2
    h = bn_lrelu(h, bn2_ref)
    h = jnp.dot(w2_ref[...], im2col(h), preferred_element_type=jnp.float32)

    # residual add (f32); lane-dense store
    o_ref[...] = (h + x).astype(o_ref.dtype)


def residual_block(x_nchw, w1_hwio, w2_hwio, bn1_params, bn2_params):
    """x_nchw: (N, Cin, H, W) f32. Conv weights HWIO. BN params (4, C) rows
    = [gamma, beta, running_mean, running_var]."""
    N, Cin, H, W = x_nchw.shape
    Cmid = w1_hwio.shape[-1]
    Cout = w2_hwio.shape[-1]
    HW = H * W

    # Lane-dense activation layout: just flatten spatial, no transposes.
    x_flat = x_nchw.reshape(N, Cin, HW)

    # Conv weights -> (Cout, 9*Cin), columns ordered (kh, kw, cin) to match
    # the in-kernel im2col row order; bf16 operands for the MXU.
    w1_k = jnp.transpose(w1_hwio, (3, 0, 1, 2)).reshape(Cmid, 9 * Cin).astype(jnp.bfloat16)
    w2_k = jnp.transpose(w2_hwio, (3, 0, 1, 2)).reshape(Cout, 9 * Cmid).astype(jnp.bfloat16)

    # Fold inference-mode BatchNorm into per-channel (scale, bias): (C, 2).
    def fold_bn(p):
        g, b, m, v = p[0], p[1], p[2], p[3]
        s = g * lax.rsqrt(v + EPS)
        return jnp.stack([s, b - m * s], axis=1).astype(jnp.float32)

    bn1_sb = fold_bn(bn1_params)
    bn2_sb = fold_bn(bn2_params)

    kernel = functools.partial(_residual_block_kernel, H=H, W=W)

    out_flat = pl.pallas_call(
        kernel,
        out_shape=jax.ShapeDtypeStruct((N, Cout, HW), x_nchw.dtype),
        grid=(N,),
        in_specs=[
            pl.BlockSpec((None, Cin, HW), lambda n: (n, 0, 0)),
            pl.BlockSpec((Cmid, 9 * Cin), lambda n: (0, 0)),   # weights: grid-invariant
            pl.BlockSpec((Cout, 9 * Cmid), lambda n: (0, 0)),
            pl.BlockSpec((Cin, 2), lambda n: (0, 0)),
            pl.BlockSpec((Cmid, 2), lambda n: (0, 0)),
        ],
        out_specs=pl.BlockSpec((None, Cout, HW), lambda n: (n, 0, 0)),
        compiler_params=pltpu.CompilerParams(
            dimension_semantics=("parallel",)),
    )(x_flat, w1_k, w2_k, bn1_sb, bn2_sb)

    return out_flat.reshape(N, Cout, H, W)


def reference(x_nchw, w1_hwio, w2_hwio, bn1_params, bn2_params,
              matmul_dtype=jnp.float32):
    """Plain-JAX reference (lax conv + edge pad) in NCHW.  `matmul_dtype`
    lets the reference mirror the kernel's bf16 MXU operands (f32 accum)."""
    def bn(h, p):
        g, b, m, v = [p[i].reshape(1, -1, 1, 1) for i in range(4)]
        s = g * lax.rsqrt(v + EPS)
        return h * s + (b - m * s)

    def conv(h, w):
        hp = jnp.pad(h, ((0, 0), (0, 0), (1, 1), (1, 1)), mode="edge")
        return lax.conv_general_dilated(
            hp.astype(matmul_dtype), w.astype(matmul_dtype), (1, 1), "VALID",
            dimension_numbers=("NCHW", "HWIO", "NCHW"),
            preferred_element_type=jnp.float32)

    h = _leaky_relu(bn(x_nchw, bn1_params))
    h = conv(h, w1_hwio)
    h = _leaky_relu(bn(h, bn2_params))
    h = conv(h, w2_hwio)
    return h + x_nchw


if __name__ == "__main__":
    key = jax.random.PRNGKey(0)
    ks = jax.random.split(key, 11)

    # in_channels == out_channels (required by the residual add, stride unused).
    N, Cin, H, W = 2, 4, 16, 16
    Cout = Cin
    Cmid = 2 * Cout

    # PyTorch-style NCHW input.
    x_nchw = jax.random.normal(ks[0], (N, Cin, H, W), jnp.float32)

    # Conv weights (HWIO), kaiming-normal-like deterministic init.
    w1 = jax.random.normal(ks[1], (3, 3, Cin, Cmid), jnp.float32) * jnp.sqrt(2.0 / (Cin * 9))
    w2 = jax.random.normal(ks[2], (3, 3, Cmid, Cout), jnp.float32) * jnp.sqrt(2.0 / (Cmid * 9))

    # BatchNorm params (rows: gamma, beta, running_mean, running_var).  The
    # literal PyTorch init (bn2.weight = 0) would degenerate the block to an
    # identity, so non-trivial values are used to exercise the kernel.
    bn1 = jnp.stack([
        1.0 + 0.1 * jax.random.normal(ks[3], (Cin,)),
        0.1 * jax.random.normal(ks[4], (Cin,)),
        0.1 * jax.random.normal(ks[5], (Cin,)),
        0.5 + jax.random.uniform(ks[6], (Cin,)),
    ]).astype(jnp.float32)
    bn2 = jnp.stack([
        1.0 + 0.1 * jax.random.normal(ks[7], (Cmid,)),
        0.1 * jax.random.normal(ks[8], (Cmid,)),
        0.1 * jax.random.normal(ks[9], (Cmid,)),
        0.5 + jax.random.uniform(ks[10], (Cmid,)),
    ]).astype(jnp.float32)

    out = residual_block(x_nchw, w1, w2, bn1, bn2)
    jax.block_until_ready(out)
    assert out.shape == (N, Cout, H, W)

    # Tight check vs a reference that also uses bf16 matmul operands (f32 accum).
    ref_bf16 = reference(x_nchw, w1, w2, bn1, bn2, matmul_dtype=jnp.bfloat16)
    err_bf16 = float(jnp.max(jnp.abs(out - ref_bf16)))
    assert err_bf16 < 2e-2, f"max abs error vs bf16-operand reference {err_bf16}"

    # Looser check vs the full-f32 reference (bounds bf16 operand rounding).
    ref_f32 = reference(x_nchw, w1, w2, bn1, bn2, matmul_dtype=jnp.float32)
    err_f32 = float(jnp.max(jnp.abs(out - ref_f32)))
    assert err_f32 < 1e-1, f"max abs error vs f32 reference {err_f32}"

    print("KERNEL_OK")
</pallas_src>

<mosaic_0001>
module attributes {stable_mosaic.version = 11 : i64} {
  func.func @_residual_block_kernel(%arg0: i32, %arg1: memref<1x4x256xf32, #tpu.memory_space<vmem>>, %arg2: memref<8x36xbf16, #tpu.memory_space<vmem>>, %arg3: memref<4x72xbf16, #tpu.memory_space<vmem>>, %arg4: memref<4x2xf32, #tpu.memory_space<vmem>>, %arg5: memref<8x2xf32, #tpu.memory_space<vmem>>, %arg6: memref<1x4x256xf32, #tpu.memory_space<vmem>>) attributes {dimension_semantics = [#tpu.dimension_semantics<parallel>], iteration_bounds = array<i64: 2>, scalar_prefetch = 0 : i64, scratch_operands = 0 : i64, tpu.core_type = #tpu.core_type<tc>, window_params = [{transform_indices = @transform_0, window_bounds = array<i64: 1, 4, 256>}, {pipeline_mode = #tpu.pipeline_mode<synchronous>, transform_indices = @transform_1, window_bounds = array<i64: 8, 36>}, {pipeline_mode = #tpu.pipeline_mode<synchronous>, transform_indices = @transform_2, window_bounds = array<i64: 4, 72>}, {pipeline_mode = #tpu.pipeline_mode<synchronous>, transform_indices = @transform_3, window_bounds = array<i64: 4, 2>}, {pipeline_mode = #tpu.pipeline_mode<synchronous>, transform_indices = @transform_4, window_bounds = array<i64: 8, 2>}, {transform_indices = @transform_5, window_bounds = array<i64: 1, 4, 256>}]} {
    %c0 = arith.constant 0 : index
    %c0_0 = arith.constant 0 : index
    %c0_1 = arith.constant 0 : index
    %0 = vector.load %arg1[%c0, %c0_0, %c0_1] : memref<1x4x256xf32, #tpu.memory_space<vmem>>, vector<1x4x256xf32>
    %1 = vector.shape_cast %0 : vector<1x4x256xf32> to vector<4x256xf32>
    %c0_2 = arith.constant 0 : index
    %c0_3 = arith.constant 0 : index
    %2 = vector.load %arg4[%c0_2, %c0_3] : memref<4x2xf32, #tpu.memory_space<vmem>>, vector<4x1xf32>
    %3 = vector.broadcast %2 : vector<4x1xf32> to vector<4x256xf32>
    %4 = arith.mulf %1, %3 : vector<4x256xf32>
    %c0_4 = arith.constant 0 : index
    %c1 = arith.constant 1 : index
    %5 = vector.load %arg4[%c0_4, %c1] : memref<4x2xf32, #tpu.memory_space<vmem>>, vector<4x1xf32>
    %6 = vector.broadcast %5 : vector<4x1xf32> to vector<4x256xf32>
    %7 = arith.addf %4, %6 : vector<4x256xf32>
    %cst = arith.constant 0.000000e+00 : f32
    %8 = vector.broadcast %cst : f32 to vector<4x256xf32>
    %9 = arith.cmpf ogt, %7, %8 : vector<4x256xf32>
    %cst_5 = arith.constant 2.000000e-01 : f32
    %10 = vector.broadcast %cst_5 : f32 to vector<4x256xf32>
    %11 = arith.mulf %10, %7 : vector<4x256xf32>
    %12 = arith.select %9, %7, %11 : vector<4x256xi1>, vector<4x256xf32>
    %c0_6 = arith.constant 0 : index
    %c0_7 = arith.constant 0 : index
    %13 = vector.load %arg2[%c0_6, %c0_7] : memref<8x36xbf16, #tpu.memory_space<vmem>>, vector<8x36xbf16>
    %14 = tpu.iota {dimensions = array<i32: 1>} : vector<4x256xi32>
    %c15_i32 = arith.constant 15 : i32
    %15 = vector.broadcast %c15_i32 : i32 to vector<4x256xi32>
    %16 = arith.andi %14, %15 : vector<4x256xi32>
    %c0_i32 = arith.constant 0 : i32
    %17 = vector.broadcast %c0_i32 : i32 to vector<4x256xi32>
    %18 = arith.cmpi eq, %16, %17 : vector<4x256xi32>
    %c15_i32_8 = arith.constant 15 : i32
    %19 = vector.broadcast %c15_i32_8 : i32 to vector<4x256xi32>
    %20 = arith.cmpi eq, %16, %19 : vector<4x256xi32>
    %21 = vector.extract_strided_slice %12 {offsets = [0, 0], sizes = [4, 16], strides = [1, 1]} : vector<4x256xf32> to vector<4x16xf32>
    %22 = vector.extract_strided_slice %12 {offsets = [0, 0], sizes = [4, 240], strides = [1, 1]} : vector<4x256xf32> to vector<4x240xf32>
    %23 = tpu.concatenate %21, %22 in 1 : vector<4x16xf32>, vector<4x240xf32> -> vector<4x256xf32>
    %24 = vector.extract_strided_slice %12 {offsets = [0, 16], sizes = [4, 240], strides = [1, 1]} : vector<4x256xf32> to vector<4x240xf32>
    %25 = vector.extract_strided_slice %12 {offsets = [0, 240], sizes = [4, 16], strides = [1, 1]} : vector<4x256xf32> to vector<4x16xf32>
    %26 = tpu.concatenate %24, %25 in 1 : vector<4x240xf32>, vector<4x16xf32> -> vector<4x256xf32>
    %27 = vector.extract_strided_slice %23 {offsets = [0, 0], sizes = [4, 1], strides = [1, 1]} : vector<4x256xf32> to vector<4x1xf32>
    %28 = vector.extract_strided_slice %23 {offsets = [0, 0], sizes = [4, 255], strides = [1, 1]} : vector<4x256xf32> to vector<4x255xf32>
    %29 = tpu.concatenate %27, %28 in 1 : vector<4x1xf32>, vector<4x255xf32> -> vector<4x256xf32>
    %30 = arith.select %18, %23, %29 : vector<4x256xi1>, vector<4x256xf32>
    %31 = vector.extract_strided_slice %23 {offsets = [0, 1], sizes = [4, 255], strides = [1, 1]} : vector<4x256xf32> to vector<4x255xf32>
    %32 = vector.extract_strided_slice %23 {offsets = [0, 255], sizes = [4, 1], strides = [1, 1]} : vector<4x256xf32> to vector<4x1xf32>
    %33 = tpu.concatenate %31, %32 in 1 : vector<4x255xf32>, vector<4x1xf32> -> vector<4x256xf32>
    %34 = arith.select %20, %23, %33 : vector<4x256xi1>, vector<4x256xf32>
    %35 = vector.extract_strided_slice %12 {offsets = [0, 0], sizes = [4, 1], strides = [1, 1]} : vector<4x256xf32> to vector<4x1xf32>
    %36 = vector.extract_strided_slice %12 {offsets = [0, 0], sizes = [4, 255], strides = [1, 1]} : vector<4x256xf32> to vector<4x255xf32>
    %37 = tpu.concatenate %35, %36 in 1 : vector<4x1xf32>, vector<4x255xf32> -> vector<4x256xf32>
    %38 = arith.select %18, %12, %37 : vector<4x256xi1>, vector<4x256xf32>
    %39 = vector.extract_strided_slice %12 {offsets = [0, 1], sizes = [4, 255], strides = [1, 1]} : vector<4x256xf32> to vector<4x255xf32>
    %40 = vector.extract_strided_slice %12 {offsets = [0, 255], sizes = [4, 1], strides = [1, 1]} : vector<4x256xf32> to vector<4x1xf32>
    %41 = tpu.concatenate %39, %40 in 1 : vector<4x255xf32>, vector<4x1xf32> -> vector<4x256xf32>
    %42 = arith.select %20, %12, %41 : vector<4x256xi1>, vector<4x256xf32>
    %43 = vector.extract_strided_slice %26 {offsets = [0, 0], sizes = [4, 1], strides = [1, 1]} : vector<4x256xf32> to vector<4x1xf32>
    %44 = vector.extract_strided_slice %26 {offsets = [0, 0], sizes = [4, 255], strides = [1, 1]} : vector<4x256xf32> to vector<4x255xf32>
    %45 = tpu.concatenate %43, %44 in 1 : vector<4x1xf32>, vector<4x255xf32> -> vector<4x256xf32>
    %46 = arith.select %18, %26, %45 : vector<4x256xi1>, vector<4x256xf32>
    %47 = vector.extract_strided_slice %26 {offsets = [0, 1], sizes = [4, 255], strides = [1, 1]} : vector<4x256xf32> to vector<4x255xf32>
    %48 = vector.extract_strided_slice %26 {offsets = [0, 255], sizes = [4, 1], strides = [1, 1]} : vector<4x256xf32> to vector<4x1xf32>
    %49 = tpu.concatenate %47, %48 in 1 : vector<4x255xf32>, vector<4x1xf32> -> vector<4x256xf32>
    %50 = arith.select %20, %26, %49 : vector<4x256xi1>, vector<4x256xf32>
    %51 = tpu.concatenate %30, %23, %34, %38, %12, %42, %46, %26, %50 in 0 : vector<4x256xf32>, vector<4x256xf32>, vector<4x256xf32>, vector<4x256xf32>, vector<4x256xf32>, vector<4x256xf32>, vector<4x256xf32>, vector<4x256xf32>, vector<4x256xf32> -> vector<36x256xf32>
    %52 = arith.truncf %51 : vector<36x256xf32> to vector<36x256xbf16>
    %cst_9 = arith.constant dense<0.000000e+00> : vector<8x256xf32>
    %53 = tpu.matmul %13, %52, %cst_9 {dimension_numbers = #tpu.dot_dimension_numbers<[1], [0], [0], [1], [0, 0, 1, 1], [], []>} : vector<8x36xbf16>, vector<36x256xbf16>, vector<8x256xf32> -> vector<8x256xf32>
    %c0_10 = arith.constant 0 : index
    %c0_11 = arith.constant 0 : index
    %54 = vector.load %arg5[%c0_10, %c0_11] : memref<8x2xf32, #tpu.memory_space<vmem>>, vector<8x1xf32>
    %55 = vector.broadcast %54 : vector<8x1xf32> to vector<8x256xf32>
    %56 = arith.mulf %53, %55 : vector<8x256xf32>
    %c0_12 = arith.constant 0 : index
    %c1_13 = arith.constant 1 : index
    %57 = vector.load %arg5[%c0_12, %c1_13] : memref<8x2xf32, #tpu.memory_space<vmem>>, vector<8x1xf32>
    %58 = vector.broadcast %57 : vector<8x1xf32> to vector<8x256xf32>
    %59 = arith.addf %56, %58 : vector<8x256xf32>
    %cst_14 = arith.constant 0.000000e+00 : f32
    %60 = vector.broadcast %cst_14 : f32 to vector<8x256xf32>
    %61 = arith.cmpf ogt, %59, %60 : vector<8x256xf32>
    %cst_15 = arith.constant 2.000000e-01 : f32
    %62 = vector.broadcast %cst_15 : f32 to vector<8x256xf32>
    %63 = arith.mulf %62, %59 : vector<8x256xf32>
    %64 = arith.select %61, %59, %63 : vector<8x256xi1>, vector<8x256xf32>
    %c0_16 = arith.constant 0 : index
    %c0_17 = arith.constant 0 : index
    %65 = vector.load %arg3[%c0_16, %c0_17] : memref<4x72xbf16, #tpu.memory_space<vmem>>, vector<4x72xbf16>
    %66 = tpu.iota {dimensions = array<i32: 1>} : vector<8x256xi32>
    %c15_i32_18 = arith.constant 15 : i32
    %67 = vector.broadcast %c15_i32_18 : i32 to vector<8x256xi32>
    %68 = arith.andi %66, %67 : vector<8x256xi32>
    %c0_i32_19 = arith.constant 0 : i32
    %69 = vector.broadcast %c0_i32_19 : i32 to vector<8x256xi32>
    %70 = arith.cmpi eq, %68, %69 : vector<8x256xi32>
    %c15_i32_20 = arith.constant 15 : i32
    %71 = vector.broadcast %c15_i32_20 : i32 to vector<8x256xi32>
    %72 = arith.cmpi eq, %68, %71 : vector<8x256xi32>
    %73 = vector.extract_strided_slice %64 {offsets = [0, 0], sizes = [8, 16], strides = [1, 1]} : vector<8x256xf32> to vector<8x16xf32>
    %74 = vector.extract_strided_slice %64 {offsets = [0, 0], sizes = [8, 240], strides = [1, 1]} : vector<8x256xf32> to vector<8x240xf32>
    %75 = tpu.concatenate %73, %74 in 1 : vector<8x16xf32>, vector<8x240xf32> -> vector<8x256xf32>
    %76 = vector.extract_strided_slice %64 {offsets = [0, 16], sizes = [8, 240], strides = [1, 1]} : vector<8x256xf32> to vector<8x240xf32>
    %77 = vector.extract_strided_slice %64 {offsets = [0, 240], sizes = [8, 16], strides = [1, 1]} : vector<8x256xf32> to vector<8x16xf32>
    %78 = tpu.concatenate %76, %77 in 1 : vector<8x240xf32>, vector<8x16xf32> -> vector<8x256xf32>
    %79 = vector.extract_strided_slice %75 {offsets = [0, 0], sizes = [8, 1], strides = [1, 1]} : vector<8x256xf32> to vector<8x1xf32>
    %80 = vector.extract_strided_slice %75 {offsets = [0, 0], sizes = [8, 255], strides = [1, 1]} : vector<8x256xf32> to vector<8x255xf32>
    %81 = tpu.concatenate %79, %80 in 1 : vector<8x1xf32>, vector<8x255xf32> -> vector<8x256xf32>
    %82 = arith.select %70, %75, %81 : vector<8x256xi1>, vector<8x256xf32>
    %83 = vector.extract_strided_slice %75 {offsets = [0, 1], sizes = [8, 255], strides = [1, 1]} : vector<8x256xf32> to vector<8x255xf32>
    %84 = vector.extract_strided_slice %75 {offsets = [0, 255], sizes = [8, 1], strides = [1, 1]} : vector<8x256xf32> to vector<8x1xf32>
    %85 = tpu.concatenate %83, %84 in 1 : vector<8x255xf32>, vector<8x1xf32> -> vector<8x256xf32>
    %86 = arith.select %72, %75, %85 : vector<8x256xi1>, vector<8x256xf32>
    %87 = vector.extract_strided_slice %64 {offsets = [0, 0], sizes = [8, 1], strides = [1, 1]} : vector<8x256xf32> to vector<8x1xf32>
    %88 = vector.extract_strided_slice %64 {offsets = [0, 0], sizes = [8, 255], strides = [1, 1]} : vector<8x256xf32> to vector<8x255xf32>
    %89 = tpu.concatenate %87, %88 in 1 : vector<8x1xf32>, vector<8x255xf32> -> vector<8x256xf32>
    %90 = arith.select %70, %64, %89 : vector<8x256xi1>, vector<8x256xf32>
    %91 = vector.extract_strided_slice %64 {offsets = [0, 1], sizes = [8, 255], strides = [1, 1]} : vector<8x256xf32> to vector<8x255xf32>
    %92 = vector.extract_strided_slice %64 {offsets = [0, 255], sizes = [8, 1], strides = [1, 1]} : vector<8x256xf32> to vector<8x1xf32>
    %93 = tpu.concatenate %91, %92 in 1 : vector<8x255xf32>, vector<8x1xf32> -> vector<8x256xf32>
    %94 = arith.select %72, %64, %93 : vector<8x256xi1>, vector<8x256xf32>
    %95 = vector.extract_strided_slice %78 {offsets = [0, 0], sizes = [8, 1], strides = [1, 1]} : vector<8x256xf32> to vector<8x1xf32>
    %96 = vector.extract_strided_slice %78 {offsets = [0, 0], sizes = [8, 255], strides = [1, 1]} : vector<8x256xf32> to vector<8x255xf32>
    %97 = tpu.concatenate %95, %96 in 1 : vector<8x1xf32>, vector<8x255xf32> -> vector<8x256xf32>
    %98 = arith.select %70, %78, %97 : vector<8x256xi1>, vector<8x256xf32>
    %99 = vector.extract_strided_slice %78 {offsets = [0, 1], sizes = [8, 255], strides = [1, 1]} : vector<8x256xf32> to vector<8x255xf32>
    %100 = vector.extract_strided_slice %78 {offsets = [0, 255], sizes = [8, 1], strides = [1, 1]} : vector<8x256xf32> to vector<8x1xf32>
    %101 = tpu.concatenate %99, %100 in 1 : vector<8x255xf32>, vector<8x1xf32> -> vector<8x256xf32>
    %102 = arith.select %72, %78, %101 : vector<8x256xi1>, vector<8x256xf32>
    %103 = tpu.concatenate %82, %75, %86, %90, %64, %94, %98, %78, %102 in 0 : vector<8x256xf32>, vector<8x256xf32>, vector<8x256xf32>, vector<8x256xf32>, vector<8x256xf32>, vector<8x256xf32>, vector<8x256xf32>, vector<8x256xf32>, vector<8x256xf32> -> vector<72x256xf32>
    %104 = arith.truncf %103 : vector<72x256xf32> to vector<72x256xbf16>
    %cst_21 = arith.constant dense<0.000000e+00> : vector<4x256xf32>
    %105 = tpu.matmul %65, %104, %cst_21 {dimension_numbers = #tpu.dot_dimension_numbers<[1], [0], [0], [1], [0, 0, 1, 1], [], []>} : vector<4x72xbf16>, vector<72x256xbf16>, vector<4x256xf32> -> vector<4x256xf32>
    %106 = arith.addf %105, %1 : vector<4x256xf32>
    %c0_22 = arith.constant 0 : index
    %c0_23 = arith.constant 0 : index
    %c0_24 = arith.constant 0 : index
    %107 = vector.load %arg6[%c0_22, %c0_23, %c0_24] : memref<1x4x256xf32, #tpu.memory_space<vmem>>, vector<1x4x256xf32>
    %108 = vector.shape_cast %107 : vector<1x4x256xf32> to vector<4x256xf32>
    %109 = vector.shape_cast %106 : vector<4x256xf32> to vector<1x4x256xf32>
    tpu.vector_store %arg6[%c0_22, %c0_23, %c0_24], %109 {strides = array<i32>} : memref<1x4x256xf32, #tpu.memory_space<vmem>>, vector<1x4x256xf32>,
    return
  }
  func.func @transform_0(%arg0: i32) -> (i32, i32, i32) {
    %c0_i32 = arith.constant 0 : i32
    %c0_i32_0 = arith.constant 0 : i32
    %c0_i32_1 = arith.constant 0 : i32
    return %arg0, %c0_i32, %c0_i32_0 : i32, i32, i32
  }
  func.func @transform_1(%arg0: i32) -> (i32, i32) {
    %c0_i32 = arith.constant 0 : i32
    %c0_i32_0 = arith.constant 0 : i32
    %c0_i32_1 = arith.constant 0 : i32
    return %c0_i32, %c0_i32_0 : i32, i32
  }
  func.func @transform_2(%arg0: i32) -> (i32, i32) {
    %c0_i32 = arith.constant 0 : i32
    %c0_i32_0 = arith.constant 0 : i32
    %c0_i32_1 = arith.constant 0 : i32
    return %c0_i32, %c0_i32_0 : i32, i32
  }
  func.func @transform_3(%arg0: i32) -> (i32, i32) {
    %c0_i32 = arith.constant 0 : i32
    %c0_i32_0 = arith.constant 0 : i32
    %c0_i32_1 = arith.constant 0 : i32
    return %c0_i32, %c0_i32_0 : i32, i32
  }
  func.func @transform_4(%arg0: i32) -> (i32, i32) {
    %c0_i32 = arith.constant 0 : i32
    %c0_i32_0 = arith.constant 0 : i32
    %c0_i32_1 = arith.constant 0 : i32
    return %c0_i32, %c0_i32_0 : i32, i32
  }
  func.func @transform_5(%arg0: i32) -> (i32, i32, i32) {
    %c0_i32 = arith.constant 0 : i32
    %c0_i32_0 = arith.constant 0 : i32
    %c0_i32_1 = arith.constant 0 : i32
    return %arg0, %c0_i32, %c0_i32_0 : i32, i32, i32
  }
}

</mosaic_0001>

<llo_original>
// kernel: tpu_custom_call.1
$region0: #{tpu_custom_call.1}
  #allocation0 [shape = 'u32[]', space=smem, size = 0x4, offset = 0x4, fixed_abs, tag = 'smem constant byte address 0x4 - core index']
  #allocation1 [shape = 'u32[144,128]{1,0:T(1,128)}', space=vmem, size = 0x12000, scoped, tag = 'internal scratch']
  %s0 = inlined_call_operand.vmem [shape: f32[2,4,256], index: 0, kind: input, shape index: {}]
  %s1 = inlined_call_operand.hbm [shape: bf16[8,36], index: 1, kind: input, shape index: {}]
  %s2 = inlined_call_operand.hbm [shape: bf16[4,72], index: 2, kind: input, shape index: {}]
  %s3 = inlined_call_operand.vmem [shape: f32[4,2], index: 3, kind: input, shape index: {}]
  %s4 = inlined_call_operand.vmem [shape: f32[8,2], index: 4, kind: input, shape index: {}]
  %s5 = inlined_call_operand.hbm [shape: f32[2,4,256], index: 5, kind: output, shape index: {}]
  %s6 = sld [smem:[#allocation0]]
  $region61: #{tpu_custom_call.1} parent=0
    _
  %s8 = ssub.s32 1, %s6
  %s9 = scalar_select 0, %s8, %s6
  $region1: #{tpu_custom_call.1} parent=0
    #allocation2 [shape = 'u8[2048]{0}', space=vmem, size = 0x800, scoped, tag = 'input window, operand 1, single buffered']
    #allocation3 [shape = 's32[2]{0}', space=sflag, size = 0x8, scoped, tag = 'scoped memory for tpu_custom_call.1']
    #allocation4 [shape = 's32[2]{0}', space=sflag, size = 0x8, scoped, tag = 'scoped memory for tpu_custom_call.1']
    #allocation5 [shape = 'u8[1024]{0}', space=vmem, size = 0x400, scoped, tag = 'input window, operand 2, single buffered']
    #allocation6 [shape = 's32[1]{0}', space=sflag, size = 0x4, scoped, tag = 'scoped memory for tpu_custom_call.1']
    #allocation7 [shape = 'u8[8192]{0}', space=vmem, size = 0x2000, scoped, tag = 'output window, operand 0']
    %10 = vsyncpa [#allocation3], 0
    %11 = vsyncpa [#allocation6], 0
    %12 = vsyncpa [#allocation4], 0
    %s13 = scalar_lea.sflag [#allocation4], 1
    %14 = vsyncpa %s13, 0
    loop: start=0, step=1, limit=4
    $region2: #{tpu_custom_call.1} parent=1 // loop_pre_header
      _
    $region3: #{tpu_custom_call.1} parent=1 // loop_header
      %s16 = sphi 0, %s20
      %p17 = scmp.ge.s32.totalorder %s16, 4
      %s26 = sphi 0, %s28
      %s29 = sphi 0, %s26
      %s30 = sphi 0, %s29
      %s46 = sphi 0, %s30
      %s50 = sphi 0, %s50
      %s52 = sphi 0, %s50
      %s53 = sphi 0, %s52
      %s67 = sphi 0, %s53
      %s71 = sphi 0, %s71
      %s73 = sphi 0, %s71
      %s74 = sphi 0, %s73
      %s88 = sphi 0, %s74
      %s92 = sphi 0, %s92
      %s94 = sphi 0, %s92
      %s95 = sphi 0, %s94
      %s109 = sphi 0, %s95
      %s113 = sphi 0, %s113
      %s115 = sphi 0, %s113
      %s116 = sphi 0, %s115
      %s130 = sphi 0, %s116
      %s136 = sphi 0, %s138
      %s139 = sphi 0, %s136
      %s140 = sphi 0, %s139
      %s156 = sphi 0, %s140
    $region4: #{tpu_custom_call.1} parent=1 // loop_header_branch
      %19 = sbr.rel (%p17) target = $region8
    $region5: #{tpu_custom_call.1} parent=1 // loop_body
      %s21 = ssub.s32 %s16, 1
      %s22 = ssub.s32 %s16, 2
      %s23 = sadd.s32 %s16, 1
      %s24 = ssub.s32 %s16, %s23
      %p25 = scmp.eq.s32.totalorder %s24, 0
      %s27 = sadd.s32 %s26, 1
      %s28 = scalar_select %p25, %s26, %s27
      %p31 = pneg %p25
      %p32 = scmp.eq.s32.totalorder %s16, 1
      %p33 = por %p31, %p32
      %p34 = scmp.ne.s32.totalorder %s26, %s29
      %p35 = scmp.eq.s32.totalorder %s16, 0
      %p36 = por %p34, %p35
      %p37 = scmp.ne.s32.totalorder %s26, %s29
      %p38 = scmp.eq.s32.totalorder %s21, 1
      %p39 = por %p37, %p38
      %p40 = scmp.ne.s32.totalorder %s29, %s30
      %p41 = scmp.eq.s32.totalorder %s21, 0
      %p42 = por %p40, %p41
      %p43 = scmp.ne.s32.totalorder %s29, %s30
      %p44 = scmp.eq.s32.totalorder %s22, 1
      %p45 = por %p43, %p44
      %p47 = scmp.ne.s32.totalorder %s30, %s46
      %p48 = scmp.eq.s32.totalorder %s22, 0
      %p49 = por %p47, %p48
      %s51 = sadd.s32 %s50, 1
      %p54 = scmp.eq.s32.totalorder %s16, 1
      %p55 = scmp.ne.s32.totalorder %s50, %s52
      %p56 = scmp.eq.s32.totalorder %s16, 0
      %p57 = por %p55, %p56
      %p58 = scmp.ne.s32.totalorder %s50, %s52
      %p59 = scmp.eq.s32.totalorder %s21, 1
      %p60 = por %p58, %p59
      %p61 = scmp.ne.s32.totalorder %s52, %s53
      %p62 = scmp.eq.s32.totalorder %s21, 0
      %p63 = por %p61, %p62
      %p64 = scmp.ne.s32.totalorder %s52, %s53
      %p65 = scmp.eq.s32.totalorder %s22, 1
      %p66 = por %p64, %p65
      %p68 = scmp.ne.s32.totalorder %s53, %s67
      %p69 = scmp.eq.s32.totalorder %s22, 0
      %p70 = por %p68, %p69
      %s72 = sadd.s32 %s71, 1
      %p75 = scmp.eq.s32.totalorder %s16, 1
      %p76 = scmp.ne.s32.totalorder %s71, %s73
      %p77 = scmp.eq.s32.totalorder %s16, 0
      %p78 = por %p76, %p77
      %p79 = scmp.ne.s32.totalorder %s71, %s73
      %p80 = scmp.eq.s32.totalorder %s21, 1
      %p81 = por %p79, %p80
      %p82 = scmp.ne.s32.totalorder %s73, %s74
      %p83 = scmp.eq.s32.totalorder %s21, 0
      %p84 = por %p82, %p83
      %p85 = scmp.ne.s32.totalorder %s73, %s74
      %p86 = scmp.eq.s32.totalorder %s22, 1
      %p87 = por %p85, %p86
      %p89 = scmp.ne.s32.totalorder %s74, %s88
      %p90 = scmp.eq.s32.totalorder %s22, 0
      %p91 = por %p89, %p90
      %s93 = sadd.s32 %s92, 1
      %p96 = scmp.eq.s32.totalorder %s16, 1
      %p97 = scmp.ne.s32.totalorder %s92, %s94
      %p98 = scmp.eq.s32.totalorder %s16, 0
      %p99 = por %p97, %p98
      %p100 = scmp.ne.s32.totalorder %s92, %s94
      %p101 = scmp.eq.s32.totalorder %s21, 1
      %p102 = por %p100, %p101
      %p103 = scmp.ne.s32.totalorder %s94, %s95
      %p104 = scmp.eq.s32.totalorder %s21, 0
      %p105 = por %p103, %p104
      %p106 = scmp.ne.s32.totalorder %s94, %s95
      %p107 = scmp.eq.s32.totalorder %s22, 1
      %p108 = por %p106, %p107
      %p110 = scmp.ne.s32.totalorder %s95, %s109
      %p111 = scmp.eq.s32.totalorder %s22, 0
      %p112 = por %p110, %p111
      %s114 = sadd.s32 %s113, 1
      %p117 = scmp.eq.s32.totalorder %s16, 1
      %p118 = scmp.ne.s32.totalorder %s113, %s115
      %p119 = scmp.eq.s32.totalorder %s16, 0
      %p120 = por %p118, %p119
      %p121 = scmp.ne.s32.totalorder %s113, %s115
      %p122 = scmp.eq.s32.totalorder %s21, 1
      %p123 = por %p121, %p122
      %p124 = scmp.ne.s32.totalorder %s115, %s116
      %p125 = scmp.eq.s32.totalorder %s21, 0
      %p126 = por %p124, %p125
      %p127 = scmp.ne.s32.totalorder %s115, %s116
      %p128 = scmp.eq.s32.totalorder %s22, 1
      %p129 = por %p127, %p128
      %p131 = scmp.ne.s32.totalorder %s116, %s130
      %p132 = scmp.eq.s32.totalorder %s22, 0
      %p133 = por %p131, %p132
      %s134 = ssub.s32 %s16, %s23
      %p135 = scmp.eq.s32.totalorder %s134, 0
      %s137 = sadd.s32 %s136, 1
      %s138 = scalar_select %p135, %s136, %s137
      %p141 = pneg %p135
      %p142 = scmp.eq.s32.totalorder %s16, 1
      %p143 = por %p141, %p142
      %p144 = scmp.ne.s32.totalorder %s136, %s139
      %p145 = scmp.eq.s32.totalorder %s16, 0
      %p146 = por %p144, %p145
      %p147 = scmp.ne.s32.totalorder %s136, %s139
      %p148 = scmp.eq.s32.totalorder %s21, 1
      %p149 = por %p147, %p148
      %p150 = scmp.ne.s32.totalorder %s139, %s140
      %p151 = scmp.eq.s32.totalorder %s21, 0
      %p152 = por %p150, %p151
      %p153 = scmp.ne.s32.totalorder %s139, %s140
      %p154 = scmp.eq.s32.totalorder %s22, 1
      %p155 = por %p153, %p154
      %p157 = scmp.ne.s32.totalorder %s140, %s156
      %p158 = scmp.eq.s32.totalorder %s22, 0
      %p159 = por %p157, %p158
      %p160 = scmp.le.s32.totalorder 1, %s16
      %p161 = scmp.lt.s32.totalorder %s16, 3
      %p162 = pnand %p160, %p161
      %p163 = pneg %p162
      // Predicated region
      $region9: #{tpu_custom_call.1} parent=5 // pred_check
        _
      $region10: #{tpu_custom_call.1} parent=5 // pred_check_branch
        %165 = sbr.rel (%p162) target = $region12
      $region11: #{tpu_custom_call.1} parent=5 // pred_region
        %s166 = ssub.s32 %s16, 1
        // Predicated region
        $region13: #{tpu_custom_call.1} parent=11 // pred_check
          %p167 = pneg %p63
        $region14: #{tpu_custom_call.1} parent=11 // pred_check_branch
          %169 = sbr.rel (%p167) target = $region16
        $region15: #{tpu_custom_call.1} parent=11 // pred_region
          %s171 = ssub.s32 64, 64
          %172 = vsyncadd [#allocation3], %s171
          %s174 = sshll.u32 [#allocation2], 4
          %s175 = int_to_ptr.vmem [resolvable:$true] %s174
          %177 = dma.hbm_to_vmem [thread:$0]  %s1, 64, %s175, [#allocation3]
        $region16: #{tpu_custom_call.1} parent=11 // pred_fallthru
          _
        // Predicated region
        $region17: #{tpu_custom_call.1} parent=11 // pred_check
          %p178 = pneg %p84
        $region18: #{tpu_custom_call.1} parent=11 // pred_check_branch
          %180 = sbr.rel (%p178) target = $region20
        $region19: #{tpu_custom_call.1} parent=11 // pred_region
          %s182 = ssub.s32 32, 32
          %183 = vsyncadd [#allocation6], %s182
          %s185 = sshll.u32 [#allocation5], 4
          %s186 = int_to_ptr.vmem [resolvable:$true] %s185
          %188 = dma.hbm_to_vmem [thread:$0]  %s2, 32, %s186, [#allocation6]
        $region20: #{tpu_custom_call.1} parent=11 // pred_fallthru
          _
        // Predicated region
        $region21: #{tpu_custom_call.1} parent=11 // pred_check
          %p189 = pneg %p105
        $region22: #{tpu_custom_call.1} parent=11 // pred_check_branch
          %191 = sbr.rel (%p189) target = $region24
        $region23: #{tpu_custom_call.1} parent=11 // pred_region
          _
        $region24: #{tpu_custom_call.1} parent=11 // pred_fallthru
          _
        // Predicated region
        $region25: #{tpu_custom_call.1} parent=11 // pred_check
          %p192 = pneg %p126
        $region26: #{tpu_custom_call.1} parent=11 // pred_check_branch
          %194 = sbr.rel (%p192) target = $region28
        $region27: #{tpu_custom_call.1} parent=11 // pred_region
          _
        $region28: #{tpu_custom_call.1} parent=11 // pred_fallthru
          _
      $region12: #{tpu_custom_call.1} parent=5 // pred_fallthru
        _
      %p195 = scmp.lt.s32.totalorder %s16, 2
      // Predicated region
      $region29: #{tpu_custom_call.1} parent=5 // pred_check
        %p196 = pneg %p195
      $region30: #{tpu_custom_call.1} parent=5 // pred_check_branch
        %198 = sbr.rel (%p196) target = $region32
      $region31: #{tpu_custom_call.1} parent=5 // pred_region
        // Predicated region
        $region33: #{tpu_custom_call.1} parent=31 // pred_check
          %p199 = pneg %p36
        $region34: #{tpu_custom_call.1} parent=31 // pred_check_branch
          %201 = sbr.rel (%p199) target = $region36
        $region35: #{tpu_custom_call.1} parent=31 // pred_region
          %p202 = scmp.lt.s32.totalorder %s16, 1
          %s203 = scalar_select %p202, %s16, 1
          %s204 = smul.addr %s203, 2
          %s205 = smul.addr %s204, 4
          %s206 = scalar_lea.vmem %s0, %s205
        $region36: #{tpu_custom_call.1} parent=31 // pred_fallthru
          _
      $region32: #{tpu_custom_call.1} parent=5 // pred_fallthru
        _
      %p207 = scmp.le.s32.totalorder 1, %s16
      %p208 = scmp.lt.s32.totalorder %s16, 3
      %p209 = pnand %p207, %p208
      %p210 = pneg %p209
      // Predicated region
      $region37: #{tpu_custom_call.1} parent=5 // pred_check
        _
      $region38: #{tpu_custom_call.1} parent=5 // pred_check_branch
        %212 = sbr.rel (%p209) target = $region40
      $region39: #{tpu_custom_call.1} parent=5 // pred_region
        %s213 = ssub.s32 %s16, 1
        // Predicated region
        $region41: #{tpu_custom_call.1} parent=39 // pred_check
          %p214 = pneg %p63
        $region42: #{tpu_custom_call.1} parent=39 // pred_check_branch
          %216 = sbr.rel (%p214) target = $region44
        $region43: #{tpu_custom_call.1} parent=39 // pred_region
          %217 = dma.done [#allocation3], 64
        $region44: #{tpu_custom_call.1} parent=39 // pred_fallthru
          _
        // Predicated region
        $region45: #{tpu_custom_call.1} parent=39 // pred_check
          %p218 = pneg %p84
        $region46: #{tpu_custom_call.1} parent=39 // pred_check_branch
          %220 = sbr.rel (%p218) target = $region48
        $region47: #{tpu_custom_call.1} parent=39 // pred_region
          %221 = dma.done [#allocation6], 32
        $region48: #{tpu_custom_call.1} parent=39 // pred_fallthru
          _
        %p222 = scmp.lt.s32.totalorder %s21, 1
        %s223 = scalar_select %p222, %s21, 1
        %s224 = smul.addr %s223, 2
        %s225 = smul.addr %s224, 4
        %s226 = scalar_lea.vmem %s0, %s225
        %p227 = pneg %p42
        %p228 = pneg %p39
        %p229 = pneg %p63
        %p230 = pneg %p60
        %p231 = pneg %p84
        %p232 = pneg %p81
        %p233 = pneg %p105
        %p234 = pneg %p102
        %p235 = pneg %p126
        %p236 = pneg %p123
        %p237 = pneg %p152
        %p238 = pneg %p149
        %s239 = sand.u32 %s139, 1
        %s240 = scalar_lea.sflag [#allocation4], %s239
        %s241 = sand.u32 %s139, 1
        %s242 = smul.addr %s241, 8
        %s243 = scalar_lea.vmem [#allocation7], %s242
        %p244 = scmp.lt.s32.totalorder %s21, 1
        %s245 = scalar_select %p244, %s21, 1
        %s246 = smul.addr %s245, 2
        %s247 = smul.addr %s246, 4
        %s248 = scalar_lea.vmem %s0, %s247
        %v250 = vld [vmem:[%s248] sm:$0xff]
        %v251 = vld [vmem:[%s3] sm:$0xf]
        %253 = vset.pattern.permute.xlu0 0
        %254 = vperm.xlu0 %253, %v251
        %v255 = vpop.permute.xlu0 %254
        %v257 = vunpack.c.l.s4 839922192
        %v258 = vunpack.c.0.s8 %v257
        %v259 = vlaneseq
        %v260 = vshrl.u32 %v259, 7
        %v261 = vsub.s32 %v258, %v260
        %v262 = vrot.slane %v255, %v261
        %v264 = vmul.f32 %v250, %v262
        %265 = vset.pattern.permute.xlu0 1
        %266 = vperm.xlu0 %265, %v251
        %v267 = vpop.permute.xlu0 %266
        %v269 = vunpack.c.l.s4 839922192
        %v270 = vunpack.c.0.s8 %v269
        %v271 = vlaneseq
        %v272 = vshrl.u32 %v271, 7
        %v273 = vsub.s32 %v270, %v272
        %v274 = vrot.slane %v267, %v273
        %v276 = vadd.f32 %v264, %v274
        %vm277 = vcmp.gt.f32.partialorder %v276, 0.0
        %v278 = vmul.f32 %v276, 0.2
        %v279 = vsel %vm277, %v276, %v278
        %v280 = vld [vmem:[#allocation2] sm:$0xf]
        %v281 = vlaneseq
        %v282 = vand.u32 %v281, 127
        %v283 = vadd.s32 %v282, 128
        %v284 = vand.u32 %v282, 15
        %v285 = vand.u32 %v283, 15
        %vm286 = vcmp.eq.s32.totalorder %v284, 0
        %vm287 = vcmp.eq.s32.totalorder %v285, 0
        %vm288 = vcmp.eq.s32.totalorder %v284, 15
        %vm289 = vcmp.eq.s32.totalorder %v285, 15
        %v291 = vcombine.high %v279, %v279
        %292 = vrot.lane.b32.xlu0 %v279, 16
        %v293 = vpop.permute.xlu0 %292
        %294 = vrot.lane.b32.xlu0 %v291, 16
        %v295 = vpop.permute.xlu0 %294
        %vm296 = vcmask 130048
        %v297 = vsel %vm296, %v293, %v295
        %v300 = vsel %vm296, %v279, %v293
        %301 = vrot.lane.b32.xlu0 %v279, 112
        %v302 = vpop.permute.xlu0 %301
        %303 = vrot.lane.b32.xlu0 %v291, 112
        %v304 = vpop.permute.xlu0 %303
        %vm305 = vcmask 916480
        %v306 = vsel %vm305, %v302, %v304
        %v310 = vsel %vm305, %v304, %v291
        %312 = vrot.lane.b32.xlu0 %v300, 1
        %v313 = vpop.permute.xlu0 %312
        %314 = vrot.lane.b32.xlu0 %v297, 1
        %v315 = vpop.permute.xlu0 %314
        %vm316 = vcmask 7168
        %v317 = vsel %vm316, %v313, %v315
        %v320 = vsel %vm316, %v300, %v313
        %v321 = vsel %vm286, %v300, %v320
        %v322 = vsel %vm287, %v297, %v317
        %323 = vrot.lane.b32.xlu0 %v300, 127
        %v324 = vpop.permute.xlu0 %323
        %325 = vrot.lane.b32.xlu0 %v297, 127
        %v326 = vpop.permute.xlu0 %325
        %vm327 = vcmask 1039360
        %v328 = vsel %vm327, %v324, %v326
        %v331 = vsel %vm327, %v326, %v297
        %v332 = vsel %vm288, %v300, %v328
        %v333 = vsel %vm289, %v297, %v331
        %334 = vrot.lane.b32.xlu0 %v279, 1
        %v335 = vpop.permute.xlu0 %334
        %336 = vrot.lane.b32.xlu0 %v291, 1
        %v337 = vpop.permute.xlu0 %336
        %v338 = vsel %vm316, %v335, %v337
        %v341 = vsel %vm316, %v279, %v335
        %v342 = vsel %vm286, %v279, %v341
        %v343 = vsel %vm287, %v291, %v338
        %344 = vrot.lane.b32.xlu0 %v279, 127
        %v345 = vpop.permute.xlu0 %344
        %346 = vrot.lane.b32.xlu0 %v291, 127
        %v347 = vpop.permute.xlu0 %346
        %v348 = vsel %vm327, %v345, %v347
        %v351 = vsel %vm327, %v347, %v291
        %v352 = vsel %vm288, %v279, %v348
        %v353 = vsel %vm289, %v291, %v351
        %355 = vrot.lane.b32.xlu0 %v306, 1
        %v356 = vpop.permute.xlu0 %355
        %357 = vrot.lane.b32.xlu0 %v310, 1
        %v358 = vpop.permute.xlu0 %357
        %v359 = vsel %vm316, %v356, %v358
        %v362 = vsel %vm316, %v306, %v356
        %v363 = vsel %vm286, %v306, %v362
        %v364 = vsel %vm287, %v310, %v359
        %365 = vrot.lane.b32.xlu0 %v306, 127
        %v366 = vpop.permute.xlu0 %365
        %367 = vrot.lane.b32.xlu0 %v310, 127
        %v368 = vpop.permute.xlu0 %367
        %v369 = vsel %vm327, %v366, %v368
        %v372 = vsel %vm327, %v368, %v310
        %v373 = vsel %vm288, %v306, %v369
        %v374 = vsel %vm289, %v310, %v372
        %v375 = vrot.slane %v300, 4
        %v376 = vrot.slane %v297, 4
        %v381 = vrot.slane %v342, 4
        %v382 = vrot.slane %v343, 4
        %v387 = vrot.slane %v352, 4
        %v388 = vrot.slane %v353, 4
        %v391 = vrot.slane %v306, 4
        %v392 = vrot.slane %v310, 4
        %vm395 = vcmask 1043456
        %v396 = vsel %vm395, %v321, %v375
        %v397 = vsel %vm395, %v322, %v376
        %v398 = vsel %vm395, %v332, %v381
        %v399 = vsel %vm395, %v333, %v382
        %v400 = vsel %vm395, %v279, %v387
        %v401 = vsel %vm395, %v291, %v388
        %v402 = vsel %vm395, %v363, %v391
        %v403 = vsel %vm395, %v364, %v392
        %v404 = vpack.c.bf16 %v398, %v396
        %v405 = vpack.c.bf16 %v399, %v397
        %v406 = vpack.c.bf16 %v402, %v400
        %v407 = vpack.c.bf16 %v403, %v401
        %v408 = vpack.c.bf16 %v373, %v373
        %v409 = vpack.c.bf16 %v374, %v374
        %vm410 = vcmask 293888
        %v412 = vsel %vm410, %v280, 0
        %vm414 = vcmask 1041408
        %v416 = vsel %vm414, %v408, 0
        %v419 = vsel %vm414, %v409, 0
        %421 = vmatprep.subr.bf16.mxu0 0
        %422 = vmatpush1.bf16.msra.mxu0 0
        %423 = vmatprep.subr.bf16.mxu0 0
        %424 = vmatpush1.bf16.msra.mxu0 0
        %425 = vmatprep.subr.bf16.mxu0 0
        %426 = vmatpush1.bf16.msra.mxu0 0
        %427 = vmatprep.subr.bf16.mxu0 0
        %428 = vmatpush1.bf16.msra.mxu0 0
        %429 = vmatprep.subr.bf16.mxu0 0
        %430 = vmatpush1.bf16.msra.mxu0 0
        %431 = vmatprep.subr.bf16.mxu0 %v419
        %432 = vmatpush1.bf16.msra.mxu0 %v416
        %433 = vmatprep.subr.bf16.mxu0 %v407
        %434 = vmatpush1.bf16.msra.mxu0 %v406
        %435 = vmatprep.subr.bf16.mxu0 %v405
        %436 = vmatpush1.bf16.msra.mxu0 %v404
        %437 = vmatprep.subr.bf16.mxu0 0
        %438 = vmatpush2.bf16.msra.mxu0 0
        %439 = vmatprep.subr.bf16.mxu0 0
        %440 = vmatpush2.bf16.msra.mxu0 0
        %441 = vmatprep.subr.bf16.mxu0 0
        %442 = vmatpush2.bf16.msra.mxu0 0
        %443 = vmatprep.subr.bf16.mxu0 0
        %444 = vmatpush2.bf16.msra.mxu0 0
        %445 = vmatprep.subr.bf16.mxu0 0
        %446 = vmatpush2.bf16.msra.mxu0 0
        %447 = vmatprep.subr.bf16.mxu0 0
        %448 = vmatpush2.bf16.msra.mxu0 0
        %449 = vmatprep.subr.bf16.mxu0 0
        %450 = vmatpush2.bf16.msra.mxu0 0
        %451 = vmatprep.subr.bf16.mxu0 0
        %452 = vmatpush2.bf16.msra.mxu0 0
        %453 = vmatprep.mubr.bf16.mxu0 0
        %454 = vmatmul.mubr.bf16.gmra.mxu0 %v412
        %v455 = vpop.f32.mrf.mxu0
        %v456 = vadd.f32 0.0, %v455
        %v457 = vpop.f32.mrf.mxu0
        %v458 = vadd.f32 0.0, %v457
        %v459 = vpop.f32.mrf.mxu0
        %v460 = vpop.f32.mrf.mxu0
        %461 = vdwg.mxu0
        %v462 = vld [vmem:[%s4] sm:$0xff]
        %464 = vset.pattern.permute.xlu0 0
        %465 = vperm.xlu0 %464, %v462
        %v466 = vpop.permute.xlu0 %465
        %v468 = vmul.f32 %v456, %v466
        %v469 = vmul.f32 %v458, %v466
        %470 = vset.pattern.permute.xlu0 1
        %471 = vperm.xlu0 %470, %v462
        %v472 = vpop.permute.xlu0 %471
        %v474 = vadd.f32 %v468, %v472
        %v475 = vadd.f32 %v469, %v472
        %vm476 = vcmp.gt.f32.partialorder %v474, 0.0
        %vm477 = vcmp.gt.f32.partialorder %v475, 0.0
        %v478 = vmul.f32 %v474, 0.2
        %v479 = vmul.f32 %v475, 0.2
        %v480 = vsel %vm476, %v474, %v478
        %v481 = vsel %vm477, %v475, %v479
        %v482 = vld [vmem:[#allocation5] sm:$0x3]
        %485 = vrot.lane.b32.xlu0 %v480, 16
        %v486 = vpop.permute.xlu0 %485
        %487 = vrot.lane.b32.xlu0 %v481, 16
        %v488 = vpop.permute.xlu0 %487
        %v489 = vsel %vm296, %v486, %v488
        %v492 = vsel %vm296, %v480, %v486
        %493 = vrot.lane.b32.xlu0 %v480, 112
        %v494 = vpop.permute.xlu0 %493
        %495 = vrot.lane.b32.xlu0 %v481, 112
        %v496 = vpop.permute.xlu0 %495
        %v497 = vsel %vm305, %v494, %v496
        %v500 = vsel %vm305, %v496, %v481
        %502 = vrot.lane.b32.xlu0 %v492, 1
        %v503 = vpop.permute.xlu0 %502
        %504 = vrot.lane.b32.xlu0 %v489, 1
        %v505 = vpop.permute.xlu0 %504
        %v506 = vsel %vm316, %v503, %v505
        %v509 = vsel %vm316, %v492, %v503
        %v510 = vsel %vm286, %v492, %v509
        %v511 = vsel %vm287, %v489, %v506
        %512 = vrot.lane.b32.xlu0 %v492, 127
        %v513 = vpop.permute.xlu0 %512
        %514 = vrot.lane.b32.xlu0 %v489, 127
        %v515 = vpop.permute.xlu0 %514
        %v516 = vsel %vm327, %v513, %v515
        %v519 = vsel %vm327, %v515, %v489
        %v520 = vsel %vm288, %v492, %v516
        %v521 = vsel %vm289, %v489, %v519
        %522 = vrot.lane.b32.xlu0 %v480, 1
        %v523 = vpop.permute.xlu0 %522
        %524 = vrot.lane.b32.xlu0 %v481, 1
        %v525 = vpop.permute.xlu0 %524
        %v526 = vsel %vm316, %v523, %v525
        %v529 = vsel %vm316, %v480, %v523
        %v530 = vsel %vm286, %v480, %v529
        %v531 = vsel %vm287, %v481, %v526
        %532 = vrot.lane.b32.xlu0 %v480, 127
        %v533 = vpop.permute.xlu0 %532
        %534 = vrot.lane.b32.xlu0 %v481, 127
        %v535 = vpop.permute.xlu0 %534
        %v536 = vsel %vm327, %v533, %v535
        %v539 = vsel %vm327, %v535, %v481
        %v540 = vsel %vm288, %v480, %v536
        %v541 = vsel %vm289, %v481, %v539
        %543 = vrot.lane.b32.xlu0 %v497, 1
        %v544 = vpop.permute.xlu0 %543
        %545 = vrot.lane.b32.xlu0 %v500, 1
        %v546 = vpop.permute.xlu0 %545
        %v547 = vsel %vm316, %v544, %v546
        %v550 = vsel %vm316, %v497, %v544
        %v551 = vsel %vm286, %v497, %v550
        %v552 = vsel %vm287, %v500, %v547
        %553 = vrot.lane.b32.xlu0 %v497, 127
        %v554 = vpop.permute.xlu0 %553
        %555 = vrot.lane.b32.xlu0 %v500, 127
        %v556 = vpop.permute.xlu0 %555
        %v557 = vsel %vm327, %v554, %v556
        %v560 = vsel %vm327, %v556, %v500
        %v561 = vsel %vm288, %v497, %v557
        %v562 = vsel %vm289, %v500, %v560
        %v563 = vpack.c.bf16 %v492, %v510
        %v564 = vpack.c.bf16 %v489, %v511
        %v565 = vpack.c.bf16 %v530, %v520
        %v566 = vpack.c.bf16 %v531, %v521
        %v567 = vpack.c.bf16 %v540, %v480
        %v568 = vpack.c.bf16 %v541, %v481
        %v569 = vpack.c.bf16 %v497, %v551
        %v570 = vpack.c.bf16 %v500, %v552
        %v571 = vpack.c.bf16 %v561, %v561
        %v572 = vpack.c.bf16 %v562, %v562
        %v574 = vcombine.high %v250, %v250
        %vm576 = vcmask 588800
        %v578 = vsel %vm576, %v482, 0
        %v581 = vsel %vm395, %v571, 0
        %v584 = vsel %vm395, %v572, 0
        %586 = vmatprep.subr.bf16.mxu0 0
        %587 = vmatpush1.bf16.msra.mxu0 0
        %588 = vmatprep.subr.bf16.mxu0 0
        %589 = vmatpush1.bf16.msra.mxu0 0
        %590 = vmatprep.subr.bf16.mxu0 0
        %591 = vmatpush1.bf16.msra.mxu0 0
        %592 = vmatprep.subr.bf16.mxu0 %v584
        %593 = vmatpush1.bf16.msra.mxu0 %v581
        %594 = vmatprep.subr.bf16.mxu0 %v570
        %595 = vmatpush1.bf16.msra.mxu0 %v569
        %596 = vmatprep.subr.bf16.mxu0 %v568
        %597 = vmatpush1.bf16.msra.mxu0 %v567
        %598 = vmatprep.subr.bf16.mxu0 %v566
        %599 = vmatpush1.bf16.msra.mxu0 %v565
        %600 = vmatprep.subr.bf16.mxu0 %v564
        %601 = vmatpush1.bf16.msra.mxu0 %v563
        %602 = vmatprep.subr.bf16.mxu0 0
        %603 = vmatpush2.bf16.msra.mxu0 0
        %604 = vmatprep.subr.bf16.mxu0 0
        %605 = vmatpush2.bf16.msra.mxu0 0
        %606 = vmatprep.subr.bf16.mxu0 0
        %607 = vmatpush2.bf16.msra.mxu0 0
        %608 = vmatprep.subr.bf16.mxu0 0
        %609 = vmatpush2.bf16.msra.mxu0 0
        %610 = vmatprep.subr.bf16.mxu0 0
        %611 = vmatpush2.bf16.msra.mxu0 0
        %612 = vmatprep.subr.bf16.mxu0 0
        %613 = vmatpush2.bf16.msra.mxu0 0
        %614 = vmatprep.subr.bf16.mxu0 0
        %615 = vmatpush2.bf16.msra.mxu0 0
        %616 = vmatprep.subr.bf16.mxu0 0
        %617 = vmatpush2.bf16.msra.mxu0 0
        %618 = vmatprep.mubr.bf16.mxu0 0
        %619 = vmatmul.mubr.bf16.gmra.mxu0 %v578
        %v620 = vpop.f32.mrf.mxu0
        %v621 = vadd.f32 %v250, %v620
        %v622 = vpop.f32.mrf.mxu0
        %v623 = vadd.f32 %v574, %v622
        %v624 = vpop.f32.mrf.mxu0
        %v625 = vpop.f32.mrf.mxu0
        %626 = vdwg.mxu0
        %v629 = vcombine.low %v621, %v623
        %631 = vst [vmem:[%s243] sm:$0xff] %v629
        %s632 = sand.u32 %s139, 1
        %s633 = scalar_lea.sflag [#allocation4], %s632
        %s634 = sand.u32 %s139, 1
        %s635 = smul.addr %s634, 8
        %s636 = scalar_lea.vmem [#allocation7], %s635
        // Predicated region
        $region49: #{tpu_custom_call.1} parent=39 // pred_check
          %p637 = pneg %p149
        $region50: #{tpu_custom_call.1} parent=39 // pred_check_branch
          %639 = sbr.rel (%p637) target = $region52
        $region51: #{tpu_custom_call.1} parent=39 // pred_region
          %s641 = ssub.s32 128, 128
          %642 = vsyncadd %s633, %s641
          %s643 = smul.addr %s21, 2
          %s644 = smul.addr %s643, 64
          %s645 = scalar_lea.hbm %s5, %s644
          %s647 = sshll.u32 %s636, 4
          %s648 = int_to_ptr.vmem [resolvable:$true] %s647
          %650 = dma.vmem_to_hbm [thread:$0]  %s648, 128, %s645, %s633
        $region52: #{tpu_custom_call.1} parent=39 // pred_fallthru
          _
      $region40: #{tpu_custom_call.1} parent=5 // pred_fallthru
        _
      %p651 = scmp.le.s32.totalorder 2, %s16
      // Predicated region
      $region53: #{tpu_custom_call.1} parent=5 // pred_check
        %p652 = pneg %p651
      $region54: #{tpu_custom_call.1} parent=5 // pred_check_branch
        %654 = sbr.rel (%p652) target = $region56
      $region55: #{tpu_custom_call.1} parent=5 // pred_region
        %s655 = ssub.s32 %s16, 2
        // Predicated region
        $region57: #{tpu_custom_call.1} parent=55 // pred_check
          %p656 = pneg %p155
        $region58: #{tpu_custom_call.1} parent=55 // pred_check_branch
          %658 = sbr.rel (%p656) target = $region60
        $region59: #{tpu_custom_call.1} parent=55 // pred_region
          %s659 = sand.u32 %s140, 1
          %s660 = scalar_lea.sflag [#allocation4], %s659
          %s661 = sand.u32 %s140, 1
          %s662 = smul.addr %s661, 8
          %s663 = scalar_lea.vmem [#allocation7], %s662
          %664 = dma.done %s660, 128
        $region60: #{tpu_custom_call.1} parent=55 // pred_fallthru
          _
      $region56: #{tpu_custom_call.1} parent=5 // pred_fallthru
        _
    $region6: #{tpu_custom_call.1} parent=1 // loop_footer
      %s20 = sadd.s32 1, %s16
    $region7: #{tpu_custom_call.1} parent=1 // loop_footer_branch
      %15 = sbr.rel target = $region3
    $region8: #{tpu_custom_call.1} parent=1 // loop_exit
      _
    %665 = vsyncpa [#allocation3], 1
    %s666 = scalar_lea.sflag [#allocation3], 1
    %667 = vsyncpa %s666, 1
    %668 = vsyncpa [#allocation6], 1
    %669 = vsyncpa [#allocation4], 1
    %s670 = scalar_lea.sflag [#allocation4], 1
    %671 = vsyncpa %s670, 1

</llo_original>
